<compile_context>
chip_gen: v7x
topology: tpu7x:2x2x1
jax: 0.10.0
libtpu: 0.0.40
codegen_flags: <defaults>
</compile_context>

<pallas_src>
import functools

import jax
import jax.numpy as jnp
from jax.experimental import pallas as pl
from jax.experimental.pallas import tpu as pltpu

_LANE = 128
_NEG_SLOPE = 0.01            # PyTorch nn.LeakyReLU() default negative_slope


def _nonlinear_type_kernel(x_ref, w_ref, out_ref, *, batch, in_nc):
    # x_ref:   SMEM f32[B, in_nc]
    # w_ref:   VMEM f32[8, nc_pad]   (stacked W1 rows / b1 / W2 column / b2 row)
    # out_ref: SMEM f32[B, 1]
    b1_row = w_ref[in_nc:in_nc + 1, :]        # [1, nc_pad]
    w2_row = w_ref[in_nc + 1:in_nc + 2, :]    # [1, nc_pad]
    b2_row = w_ref[in_nc + 2:in_nc + 3, :]    # [1, nc_pad], b2[type_] at lane 0
    for b in range(batch):                    # static unroll (batch == 2)
        # Layer 1 on the VPU: h = b1 + sum_k x[b, k] * W1[k, :]
        h = b1_row
        for k in range(in_nc):                # static unroll (in_nc == 3)
            h = h + x_ref[b, k] * w_ref[k:k + 1, :]   # SMEM scalar splat * vector
        # LeakyReLU
        h = jnp.where(h >= 0.0, h, h * _NEG_SLOPE)
        # Layer 2 (single gathered column): mul + full reduce; b2 folded in.
        out_ref[b, 0] = jnp.sum(h * w2_row + b2_row)


def prepare_nonlinear_type_params(w1, b1, w2, b2, type_idx):
    """One-time, host-side parameter prep (hoisted out of the hot path).

    w1: [in_nc, nc] hidden-layer weight, pre-transposed ([in, out]);
    b1: [nc]; w2: [nc, out_nc]; b2: [out_nc].
    type_idx: STATIC Python int (a traced index is unsupported by design).
    Returns (w_stacked f32[8, nc_pad], in_nc).
    """
    in_nc, nc = w1.shape
    out_nc = w2.shape[1]
    t = int(type_idx)
    if not (0 <= t < out_nc):
        raise IndexError(f"type_ index {t} out of range for out_nc={out_nc}")
    nc_pad = ((nc + _LANE - 1) // _LANE) * _LANE     # 1600 -> 1664
    n_rows = 8                                       # sublane-aligned stack
    assert in_nc + 3 <= n_rows, "stacked layout assumes in_nc <= 5"

    w_stacked = jnp.zeros((n_rows, nc_pad), jnp.float32)
    w_stacked = w_stacked.at[:in_nc, :nc].set(w1.astype(jnp.float32))
    w_stacked = w_stacked.at[in_nc, :nc].set(b1.astype(jnp.float32))
    w_stacked = w_stacked.at[in_nc + 1, :nc].set(w2[:, t].astype(jnp.float32))
    w_stacked = w_stacked.at[in_nc + 2, 0].set(b2[t].astype(jnp.float32))
    return jax.device_put(w_stacked), in_nc


def nonlinear_type_forward(inp, w_stacked, in_nc):
    """Hot path.  inp: f32[B, in_nc] -> f32[B, 1] (= full_out[:, type_:type_+1])."""
    B = inp.shape[0]
    n_rows, nc_pad = w_stacked.shape
    # Cost hint uses padded/tiled DMA sizes so XLA schedules the sub-us call sanely.
    flops = 2 * B * (in_nc + 2) * nc_pad
    bytes_accessed = 4 * n_rows * nc_pad + 4096 + 4096   # weight slab + SMEM-padded x/out
    cost = pl.CostEstimate(flops=flops, transcendentals=0,
                           bytes_accessed=bytes_accessed)
    kernel = functools.partial(_nonlinear_type_kernel, batch=B, in_nc=in_nc)
    return pl.pallas_call(
        kernel,
        out_shape=jax.ShapeDtypeStruct((B, 1), jnp.float32),
        in_specs=[
            pl.BlockSpec(memory_space=pltpu.MemorySpace.SMEM),   # x  [B, in_nc]
            pl.BlockSpec(memory_space=pltpu.MemorySpace.VMEM),   # weight slab [8, nc_pad]
        ],
        out_specs=pl.BlockSpec(memory_space=pltpu.MemorySpace.SMEM),
        cost_estimate=cost,
    )(inp.astype(jnp.float32), w_stacked)


if __name__ == "__main__":
    # Module defaults: in_nc=3, nc=1600, out_nc=18; small batch of 2.
    B, in_nc, nc, out_nc = 2, 3, 1600, 18
    key = jax.random.PRNGKey(0)
    k1, k2, k3, k4, k5 = jax.random.split(key, 5)

    inp = jax.random.normal(k1, (B, in_nc), dtype=jnp.float32)
    # nn.Linear parameters, weights stored pre-transposed as [in, out].
    w1 = jax.random.normal(k2, (in_nc, nc), dtype=jnp.float32) / jnp.sqrt(jnp.float32(in_nc))
    b1 = jax.random.normal(k3, (nc,), dtype=jnp.float32) * 0.01
    w2 = jax.random.normal(k4, (nc, out_nc), dtype=jnp.float32) / jnp.sqrt(jnp.float32(nc))
    b2 = jax.random.normal(k5, (out_nc,), dtype=jnp.float32) * 0.01

    type_ = 5  # class index to gather

    # One-time prep (hoisted out of the per-call hot path).
    w_stacked, in_nc_static = prepare_nonlinear_type_params(w1, b1, w2, b2, type_)
    w_stacked = jax.block_until_ready(w_stacked)

    out = nonlinear_type_forward(inp, w_stacked, in_nc_static)
    out = jax.block_until_ready(out)

    # Pure-JAX reference check.
    h_ref = jnp.dot(inp, w1) + b1
    h_ref = jnp.where(h_ref >= 0.0, h_ref, _NEG_SLOPE * h_ref)
    o_ref = jnp.dot(h_ref, w2) + b2
    ref = o_ref[:, type_:type_ + 1]

    assert out.shape == (B, 1)
    assert jnp.allclose(out, ref, atol=1e-4, rtol=1e-4), (out, ref)
    print("KERNEL_OK")
</pallas_src>

<mosaic_0001>
module attributes {stable_mosaic.version = 11 : i64} {
  func.func @_nonlinear_type_kernel(%arg0: memref<2x3xf32, #tpu.memory_space<smem>>, %arg1: memref<8x1664xf32, #tpu.memory_space<vmem>>, %arg2: memref<2x1xf32, #tpu.memory_space<smem>>) attributes {dimension_semantics = [], scalar_prefetch = 0 : i64, scratch_operands = 0 : i64, tpu.core_type = #tpu.core_type<tc>} {
    %c3 = arith.constant 3 : index
    %c0 = arith.constant 0 : index
    %0 = vector.load %arg1[%c3, %c0] : memref<8x1664xf32, #tpu.memory_space<vmem>>, vector<1x1664xf32>
    %c4 = arith.constant 4 : index
    %c0_0 = arith.constant 0 : index
    %1 = vector.load %arg1[%c4, %c0_0] : memref<8x1664xf32, #tpu.memory_space<vmem>>, vector<1x1664xf32>
    %c5 = arith.constant 5 : index
    %c0_1 = arith.constant 0 : index
    %2 = vector.load %arg1[%c5, %c0_1] : memref<8x1664xf32, #tpu.memory_space<vmem>>, vector<1x1664xf32>
    %c0_2 = arith.constant 0 : index
    %c0_3 = arith.constant 0 : index
    %3 = memref.load %arg0[%c0_2, %c0_3] : memref<2x3xf32, #tpu.memory_space<smem>>
    %c0_4 = arith.constant 0 : index
    %c0_5 = arith.constant 0 : index
    %4 = vector.load %arg1[%c0_4, %c0_5] : memref<8x1664xf32, #tpu.memory_space<vmem>>, vector<1x1664xf32>
    %5 = vector.broadcast %3 : f32 to vector<1x1664xf32>
    %6 = arith.mulf %5, %4 : vector<1x1664xf32>
    %7 = arith.addf %0, %6 : vector<1x1664xf32>
    %c0_6 = arith.constant 0 : index
    %c1 = arith.constant 1 : index
    %8 = memref.load %arg0[%c0_6, %c1] : memref<2x3xf32, #tpu.memory_space<smem>>
    %c1_7 = arith.constant 1 : index
    %c0_8 = arith.constant 0 : index
    %9 = vector.load %arg1[%c1_7, %c0_8] : memref<8x1664xf32, #tpu.memory_space<vmem>>, vector<1x1664xf32>
    %10 = vector.broadcast %8 : f32 to vector<1x1664xf32>
    %11 = arith.mulf %10, %9 : vector<1x1664xf32>
    %12 = arith.addf %7, %11 : vector<1x1664xf32>
    %c0_9 = arith.constant 0 : index
    %c2 = arith.constant 2 : index
    %13 = memref.load %arg0[%c0_9, %c2] : memref<2x3xf32, #tpu.memory_space<smem>>
    %c2_10 = arith.constant 2 : index
    %c0_11 = arith.constant 0 : index
    %14 = vector.load %arg1[%c2_10, %c0_11] : memref<8x1664xf32, #tpu.memory_space<vmem>>, vector<1x1664xf32>
    %15 = vector.broadcast %13 : f32 to vector<1x1664xf32>
    %16 = arith.mulf %15, %14 : vector<1x1664xf32>
    %17 = arith.addf %12, %16 : vector<1x1664xf32>
    %cst = arith.constant 0.000000e+00 : f32
    %18 = vector.broadcast %cst : f32 to vector<1x1664xf32>
    %19 = arith.cmpf oge, %17, %18 : vector<1x1664xf32>
    %cst_12 = arith.constant 0.00999999977 : f32
    %20 = vector.broadcast %cst_12 : f32 to vector<1x1664xf32>
    %21 = arith.mulf %17, %20 : vector<1x1664xf32>
    %22 = arith.select %19, %17, %21 : vector<1x1664xi1>, vector<1x1664xf32>
    %23 = arith.mulf %22, %1 : vector<1x1664xf32>
    %24 = arith.addf %23, %2 : vector<1x1664xf32>
    %25 = vector.shape_cast %24 : vector<1x1664xf32> to vector<1x1x1664xf32>
    %cst_13 = arith.constant dense<0.000000e+00> : vector<1xf32>
    %26 = vector.multi_reduction <add>, %25, %cst_13 [1, 2] : vector<1x1x1664xf32> to vector<1xf32>
    %27 = vector.shape_cast %26 : vector<1xf32> to vector<1x1x1xf32>
    %28 = vector.extract %27[0, 0, 0] : f32 from vector<1x1x1xf32>
    %c0_14 = arith.constant 0 : index
    %c0_15 = arith.constant 0 : index
    %29 = memref.load %arg2[%c0_14, %c0_15] : memref<2x1xf32, #tpu.memory_space<smem>>
    memref.store %28, %arg2[%c0_14, %c0_15] : memref<2x1xf32, #tpu.memory_space<smem>>
    %c1_16 = arith.constant 1 : index
    %c0_17 = arith.constant 0 : index
    %30 = memref.load %arg0[%c1_16, %c0_17] : memref<2x3xf32, #tpu.memory_space<smem>>
    %c0_18 = arith.constant 0 : index
    %c0_19 = arith.constant 0 : index
    %31 = vector.load %arg1[%c0_18, %c0_19] : memref<8x1664xf32, #tpu.memory_space<vmem>>, vector<1x1664xf32>
    %32 = vector.broadcast %30 : f32 to vector<1x1664xf32>
    %33 = arith.mulf %32, %31 : vector<1x1664xf32>
    %34 = arith.addf %0, %33 : vector<1x1664xf32>
    %c1_20 = arith.constant 1 : index
    %c1_21 = arith.constant 1 : index
    %35 = memref.load %arg0[%c1_20, %c1_21] : memref<2x3xf32, #tpu.memory_space<smem>>
    %c1_22 = arith.constant 1 : index
    %c0_23 = arith.constant 0 : index
    %36 = vector.load %arg1[%c1_22, %c0_23] : memref<8x1664xf32, #tpu.memory_space<vmem>>, vector<1x1664xf32>
    %37 = vector.broadcast %35 : f32 to vector<1x1664xf32>
    %38 = arith.mulf %37, %36 : vector<1x1664xf32>
    %39 = arith.addf %34, %38 : vector<1x1664xf32>
    %c1_24 = arith.constant 1 : index
    %c2_25 = arith.constant 2 : index
    %40 = memref.load %arg0[%c1_24, %c2_25] : memref<2x3xf32, #tpu.memory_space<smem>>
    %c2_26 = arith.constant 2 : index
    %c0_27 = arith.constant 0 : index
    %41 = vector.load %arg1[%c2_26, %c0_27] : memref<8x1664xf32, #tpu.memory_space<vmem>>, vector<1x1664xf32>
    %42 = vector.broadcast %40 : f32 to vector<1x1664xf32>
    %43 = arith.mulf %42, %41 : vector<1x1664xf32>
    %44 = arith.addf %39, %43 : vector<1x1664xf32>
    %cst_28 = arith.constant 0.000000e+00 : f32
    %45 = vector.broadcast %cst_28 : f32 to vector<1x1664xf32>
    %46 = arith.cmpf oge, %44, %45 : vector<1x1664xf32>
    %cst_29 = arith.constant 0.00999999977 : f32
    %47 = vector.broadcast %cst_29 : f32 to vector<1x1664xf32>
    %48 = arith.mulf %44, %47 : vector<1x1664xf32>
    %49 = arith.select %46, %44, %48 : vector<1x1664xi1>, vector<1x1664xf32>
    %50 = arith.mulf %49, %1 : vector<1x1664xf32>
    %51 = arith.addf %50, %2 : vector<1x1664xf32>
    %52 = vector.shape_cast %51 : vector<1x1664xf32> to vector<1x1x1664xf32>
    %cst_30 = arith.constant dense<0.000000e+00> : vector<1xf32>
    %53 = vector.multi_reduction <add>, %52, %cst_30 [1, 2] : vector<1x1x1664xf32> to vector<1xf32>
    %54 = vector.shape_cast %53 : vector<1xf32> to vector<1x1x1xf32>
    %55 = vector.extract %54[0, 0, 0] : f32 from vector<1x1x1xf32>
    %c1_31 = arith.constant 1 : index
    %c0_32 = arith.constant 0 : index
    %56 = memref.load %arg2[%c1_31, %c0_32] : memref<2x1xf32, #tpu.memory_space<smem>>
    memref.store %55, %arg2[%c1_31, %c0_32] : memref<2x1xf32, #tpu.memory_space<smem>>
    return
  }
}

</mosaic_0001>

<llo_original>
// kernel: tpu_custom_call.1
$region0: #{tpu_custom_call.1}
  #allocation0 [shape = 'u32[]', space=smem, size = 0x4, offset = 0x4, fixed_abs, tag = 'smem constant byte address 0x4 - core index']
  #allocation1 [shape = 'u32[144,128]{1,0:T(1,128)}', space=vmem, size = 0x12000, scoped, tag = 'internal scratch']
  %s0 = inlined_call_operand.hbm [shape: f32[2,3], index: 0, kind: input, shape index: {}]
  %s1 = inlined_call_operand.hbm [shape: f32[8,1664], index: 1, kind: input, shape index: {}]
  %s2 = inlined_call_operand.vmem [shape: f32[2,1], index: 2, kind: output, shape index: {}]
  %s3 = sld [smem:[#allocation0]]
  $region26: #{tpu_custom_call.1} parent=0
    _
  %s5 = ssub.s32 1, %s3
  %s6 = scalar_select 0, %s5, %s3
  $region1: #{tpu_custom_call.1} parent=0
    #allocation2 [shape = 'u8[1024]{0}', space=smem, size = 0x400, scoped, tag = 'input window, operand 0, single buffered']
    #allocation3 [shape = 's32[1]{0}', space=sflag, size = 0x4, scoped, tag = 'scoped memory for tpu_custom_call.1']
    #allocation4 [shape = 's32[1]{0}', space=sflag, size = 0x4, scoped, tag = 'scoped memory for tpu_custom_call.1']
    #allocation5 [shape = 's32[1]{0}', space=sflag, size = 0x4, scoped, tag = 'scoped memory for tpu_custom_call.1']
    #allocation6 [shape = 'u8[53248]{0}', space=vmem, size = 0xd000, scoped, tag = 'input window, operand 1, single buffered']
    #allocation7 [shape = 'u8[1024]{0}', space=smem, size = 0x400, scoped, tag = 'output window, operand 0, single buffered']
    %7 = vsyncpa [#allocation4], 0
    %8 = vsyncpa [#allocation3], 0
    %9 = vsyncpa [#allocation5], 0
    // Predicated region
    $region2: #{tpu_custom_call.1} parent=1 // pred_check
      _
    $region3: #{tpu_custom_call.1} parent=1 // pred_check_branch
      %11 = sbr.rel (0) target = $region5
    $region4: #{tpu_custom_call.1} parent=1 // pred_region
      %s13 = ssub.s32 32, 32
      %14 = vsyncadd [#allocation4], %s13
      %17 = dma.hbm_to_smem %s0, 32, [#allocation2], [#allocation4]
    $region5: #{tpu_custom_call.1} parent=1 // pred_fallthru
      _
    // Predicated region
    $region6: #{tpu_custom_call.1} parent=1 // pred_check
      _
    $region7: #{tpu_custom_call.1} parent=1 // pred_check_branch
      %19 = sbr.rel (0) target = $region9
    $region8: #{tpu_custom_call.1} parent=1 // pred_region
      %s21 = ssub.s32 1664, 1664
      %22 = vsyncadd [#allocation3], %s21
      %s24 = sshll.u32 [#allocation6], 4
      %s25 = int_to_ptr.vmem [resolvable:$true] %s24
      %27 = dma.hbm_to_vmem [thread:$0]  %s1, 1664, %s25, [#allocation3]
    $region9: #{tpu_custom_call.1} parent=1 // pred_fallthru
      _
    // Predicated region
    $region10: #{tpu_custom_call.1} parent=1 // pred_check
      _
    $region11: #{tpu_custom_call.1} parent=1 // pred_check_branch
      %29 = sbr.rel (0) target = $region13
    $region12: #{tpu_custom_call.1} parent=1 // pred_region
      %30 = dma.done [#allocation4], 32
    $region13: #{tpu_custom_call.1} parent=1 // pred_fallthru
      _
    // Predicated region
    $region14: #{tpu_custom_call.1} parent=1 // pred_check
      _
    $region15: #{tpu_custom_call.1} parent=1 // pred_check_branch
      %32 = sbr.rel (0) target = $region17
    $region16: #{tpu_custom_call.1} parent=1 // pred_region
      %33 = dma.done [#allocation3], 1664
    $region17: #{tpu_custom_call.1} parent=1 // pred_fallthru
      _
    %34 = sfence
    %s35 = scalar_lea.vmem [#allocation6], 3
    %v36 = vld [vmem:[%s35] ss:$8 sm:$0xf]
    %v37 = vld [vmem:[%s35] ss:$8 sm:$0xf0]
    %v38 = vor.u32 %v36, %v37
    %s39 = scalar_lea.vmem [#allocation6], 67
    %v40 = vld [vmem:[%s39] ss:$8 sm:$0xf]
    %v41 = vld [vmem:[%s39] ss:$8 sm:$0x10]
    %v42 = vor.u32 %v40, %v41
    %s43 = scalar_lea.vmem [#allocation6], 4
    %v44 = vld [vmem:[%s43] ss:$8 sm:$0xf]
    %v45 = vld [vmem:[%s43] ss:$8 sm:$0xf0]
    %v46 = vor.u32 %v44, %v45
    %s47 = scalar_lea.vmem [#allocation6], 68
    %v48 = vld [vmem:[%s47] ss:$8 sm:$0xf]
    %v49 = vld [vmem:[%s47] ss:$8 sm:$0x10]
    %v50 = vor.u32 %v48, %v49
    %s51 = scalar_lea.vmem [#allocation6], 5
    %v52 = vld [vmem:[%s51] ss:$8 sm:$0xf]
    %v53 = vld [vmem:[%s51] ss:$8 sm:$0xf0]
    %v54 = vor.u32 %v52, %v53
    %s55 = scalar_lea.vmem [#allocation6], 69
    %v56 = vld [vmem:[%s55] ss:$8 sm:$0xf]
    %v57 = vld [vmem:[%s55] ss:$8 sm:$0x10]
    %v58 = vor.u32 %v56, %v57
    %s59 = sld [smem:[#allocation2]]
    %v60 = vld [vmem:[#allocation6] ss:$8 sm:$0xf]
    %v61 = vld [vmem:[#allocation6] ss:$8 sm:$0xf0]
    %v62 = vor.u32 %v60, %v61
    %s63 = scalar_lea.vmem [#allocation6], 64
    %v64 = vld [vmem:[%s63] ss:$8 sm:$0xf]
    %v65 = vld [vmem:[%s63] ss:$8 sm:$0x10]
    %v66 = vor.u32 %v64, %v65
    %v67 = vstv %s59
    %v68 = vmul.f32 %v67, %v62
    %v69 = vmul.f32 %v67, %v66
    %v70 = vadd.f32 %v38, %v68
    %v71 = vadd.f32 %v42, %v69
    %s72 = sld [smem:[#allocation2 + $0x1]]
    %s73 = scalar_lea.vmem [#allocation6], 1
    %v74 = vld [vmem:[%s73] ss:$8 sm:$0xf]
    %v75 = vld [vmem:[%s73] ss:$8 sm:$0xf0]
    %v76 = vor.u32 %v74, %v75
    %s77 = scalar_lea.vmem [#allocation6], 65
    %v78 = vld [vmem:[%s77] ss:$8 sm:$0xf]
    %v79 = vld [vmem:[%s77] ss:$8 sm:$0x10]
    %v80 = vor.u32 %v78, %v79
    %v81 = vstv %s72
    %v82 = vmul.f32 %v81, %v76
    %v83 = vmul.f32 %v81, %v80
    %v84 = vadd.f32 %v70, %v82
    %v85 = vadd.f32 %v71, %v83
    %s86 = sld [smem:[#allocation2 + $0x2]]
    %s87 = scalar_lea.vmem [#allocation6], 2
    %v88 = vld [vmem:[%s87] ss:$8 sm:$0xf]
    %v89 = vld [vmem:[%s87] ss:$8 sm:$0xf0]
    %v90 = vor.u32 %v88, %v89
    %s91 = scalar_lea.vmem [#allocation6], 66
    %v92 = vld [vmem:[%s91] ss:$8 sm:$0xf]
    %v93 = vld [vmem:[%s91] ss:$8 sm:$0x10]
    %v94 = vor.u32 %v92, %v93
    %v95 = vstv %s86
    %v96 = vmul.f32 %v95, %v90
    %v97 = vmul.f32 %v95, %v94
    %v98 = vadd.f32 %v84, %v96
    %v99 = vadd.f32 %v85, %v97
    %vm100 = vcmp.ge.f32.partialorder %v98, 0.0
    %vm101 = vcmp.ge.f32.partialorder %v99, 0.0
    %v102 = vmul.f32 %v98, 0.01
    %v103 = vmul.f32 %v99, 0.01
    %v104 = vsel %vm100, %v98, %v102
    %v105 = vsel %vm101, %v99, %v103
    %v106 = vmul.f32 %v104, %v46
    %v107 = vmul.f32 %v105, %v50
    %v108 = vadd.f32 %v106, %v54
    %v109 = vadd.f32 %v107, %v58
    %v112 = vlaneseq
    %v113 = vshrl.u32 %v112, 7
    %v114 = vsub.s32 0, %v113
    %v115 = vrot.slane %v108, %v114
    %v116 = vlaneseq
    %v117 = vshrl.u32 %v116, 7
    %v118 = vsub.s32 1, %v117
    %v119 = vrot.slane %v108, %v118
    %v120 = vlaneseq
    %v121 = vshrl.u32 %v120, 7
    %v122 = vsub.s32 2, %v121
    %v123 = vrot.slane %v108, %v122
    %v124 = vlaneseq
    %v125 = vshrl.u32 %v124, 7
    %v126 = vsub.s32 3, %v125
    %v127 = vrot.slane %v108, %v126
    %v128 = vlaneseq
    %v129 = vshrl.u32 %v128, 7
    %v130 = vsub.s32 4, %v129
    %v131 = vrot.slane %v108, %v130
    %v132 = vlaneseq
    %v133 = vshrl.u32 %v132, 7
    %v134 = vsub.s32 5, %v133
    %v135 = vrot.slane %v108, %v134
    %v136 = vlaneseq
    %v137 = vshrl.u32 %v136, 7
    %v138 = vsub.s32 6, %v137
    %v139 = vrot.slane %v108, %v138
    %v140 = vlaneseq
    %v141 = vshrl.u32 %v140, 7
    %v142 = vsub.s32 7, %v141
    %v143 = vrot.slane %v108, %v142
    %v144 = vlaneseq
    %v145 = vshrl.u32 %v144, 7
    %v146 = vsub.s32 0, %v145
    %v147 = vrot.slane %v109, %v146
    %v148 = vlaneseq
    %v149 = vshrl.u32 %v148, 7
    %v150 = vsub.s32 1, %v149
    %v151 = vrot.slane %v109, %v150
    %v152 = vlaneseq
    %v153 = vshrl.u32 %v152, 7
    %v154 = vsub.s32 2, %v153
    %v155 = vrot.slane %v109, %v154
    %v156 = vlaneseq
    %v157 = vshrl.u32 %v156, 7
    %v158 = vsub.s32 3, %v157
    %v159 = vrot.slane %v109, %v158
    %v160 = vlaneseq
    %v161 = vshrl.u32 %v160, 7
    %v162 = vsub.s32 4, %v161
    %v163 = vrot.slane %v109, %v162
    %vm177 = vcmask 1040384
    %v178 = vsel %vm177, %v115, 0.0
    %v179 = vsel %vm177, %v119, 0.0
    %v180 = vadd.f32 %v178, %v179
    %v181 = vsel %vm177, %v123, 0.0
    %v182 = vadd.f32 %v180, %v181
    %v183 = vsel %vm177, %v127, 0.0
    %v184 = vadd.f32 %v182, %v183
    %v185 = vsel %vm177, %v131, 0.0
    %v186 = vadd.f32 %v184, %v185
    %v187 = vsel %vm177, %v135, 0.0
    %v188 = vadd.f32 %v186, %v187
    %v189 = vsel %vm177, %v139, 0.0
    %v190 = vadd.f32 %v188, %v189
    %v191 = vsel %vm177, %v143, 0.0
    %v192 = vadd.f32 %v190, %v191
    %v193 = vsel %vm177, %v147, 0.0
    %v194 = vadd.f32 %v192, %v193
    %v195 = vsel %vm177, %v151, 0.0
    %v196 = vadd.f32 %v194, %v195
    %v197 = vsel %vm177, %v155, 0.0
    %v198 = vadd.f32 %v196, %v197
    %v199 = vsel %vm177, %v159, 0.0
    %v200 = vadd.f32 %v198, %v199
    %v201 = vsel %vm177, %v163, 0.0
    %v202 = vadd.f32 %v200, %v201
    %203 = vadd.xlane.f32.xlu0 %v202
    %v204 = vpop.xlane.xlu0 %203
    %v205 = vrot.slane %v204, 4
    %v206 = vadd.f32 %v204, %v205
    %v207 = vrot.slane %v206, 2
    %v208 = vadd.f32 %v206, %v207
    %v209 = vrot.slane %v208, 1
    %v210 = vadd.f32 %v208, %v209
    %s211 = vtos %v210
    %s212 = scalar_lea.smem [#allocation7], 0
    %213 = sst [smem:[%s212]] %s211
    %s214 = sld [smem:[#allocation2 + $0x80]]
    %v215 = vld [vmem:[#allocation6] ss:$8 sm:$0xf]
    %v216 = vld [vmem:[#allocation6] ss:$8 sm:$0xf0]
    %v217 = vor.u32 %v215, %v216
    %v218 = vld [vmem:[%s63] ss:$8 sm:$0xf]
    %v219 = vld [vmem:[%s63] ss:$8 sm:$0x10]
    %v220 = vor.u32 %v218, %v219
    %v221 = vstv %s214
    %v222 = vmul.f32 %v221, %v217
    %v223 = vmul.f32 %v221, %v220
    %v224 = vadd.f32 %v38, %v222
    %v225 = vadd.f32 %v42, %v223
    %s226 = sld [smem:[#allocation2 + $0x81]]
    %v227 = vld [vmem:[%s73] ss:$8 sm:$0xf]
    %v228 = vld [vmem:[%s73] ss:$8 sm:$0xf0]
    %v229 = vor.u32 %v227, %v228
    %v230 = vld [vmem:[%s77] ss:$8 sm:$0xf]
    %v231 = vld [vmem:[%s77] ss:$8 sm:$0x10]
    %v232 = vor.u32 %v230, %v231
    %v233 = vstv %s226
    %v234 = vmul.f32 %v233, %v229
    %v235 = vmul.f32 %v233, %v232
    %v236 = vadd.f32 %v224, %v234
    %v237 = vadd.f32 %v225, %v235
    %s238 = sld [smem:[#allocation2 + $0x82]]
    %v239 = vld [vmem:[%s87] ss:$8 sm:$0xf]
    %v240 = vld [vmem:[%s87] ss:$8 sm:$0xf0]
    %v241 = vor.u32 %v239, %v240
    %v242 = vld [vmem:[%s91] ss:$8 sm:$0xf]
    %v243 = vld [vmem:[%s91] ss:$8 sm:$0x10]
    %v244 = vor.u32 %v242, %v243
    %v245 = vstv %s238
    %v246 = vmul.f32 %v245, %v241
    %v247 = vmul.f32 %v245, %v244
    %v248 = vadd.f32 %v236, %v246
    %v249 = vadd.f32 %v237, %v247
    %vm250 = vcmp.ge.f32.partialorder %v248, 0.0
    %vm251 = vcmp.ge.f32.partialorder %v249, 0.0
    %v252 = vmul.f32 %v248, 0.01
    %v253 = vmul.f32 %v249, 0.01
    %v254 = vsel %vm250, %v248, %v252
    %v255 = vsel %vm251, %v249, %v253
    %v256 = vmul.f32 %v254, %v46
    %v257 = vmul.f32 %v255, %v50
    %v258 = vadd.f32 %v256, %v54
    %v259 = vadd.f32 %v257, %v58
    %v262 = vlaneseq
    %v263 = vshrl.u32 %v262, 7
    %v264 = vsub.s32 0, %v263
    %v265 = vrot.slane %v258, %v264
    %v266 = vlaneseq
    %v267 = vshrl.u32 %v266, 7
    %v268 = vsub.s32 1, %v267
    %v269 = vrot.slane %v258, %v268
    %v270 = vlaneseq
    %v271 = vshrl.u32 %v270, 7
    %v272 = vsub.s32 2, %v271
    %v273 = vrot.slane %v258, %v272
    %v274 = vlaneseq
    %v275 = vshrl.u32 %v274, 7
    %v276 = vsub.s32 3, %v275
    %v277 = vrot.slane %v258, %v276
    %v278 = vlaneseq
    %v279 = vshrl.u32 %v278, 7
    %v280 = vsub.s32 4, %v279
    %v281 = vrot.slane %v258, %v280
    %v282 = vlaneseq
    %v283 = vshrl.u32 %v282, 7
    %v284 = vsub.s32 5, %v283
    %v285 = vrot.slane %v258, %v284
    %v286 = vlaneseq
    %v287 = vshrl.u32 %v286, 7
    %v288 = vsub.s32 6, %v287
    %v289 = vrot.slane %v258, %v288
    %v290 = vlaneseq
    %v291 = vshrl.u32 %v290, 7
    %v292 = vsub.s32 7, %v291
    %v293 = vrot.slane %v258, %v292
    %v294 = vlaneseq
    %v295 = vshrl.u32 %v294, 7
    %v296 = vsub.s32 0, %v295
    %v297 = vrot.slane %v259, %v296
    %v298 = vlaneseq
    %v299 = vshrl.u32 %v298, 7
    %v300 = vsub.s32 1, %v299
    %v301 = vrot.slane %v259, %v300
    %v302 = vlaneseq
    %v303 = vshrl.u32 %v302, 7
    %v304 = vsub.s32 2, %v303
    %v305 = vrot.slane %v259, %v304
    %v306 = vlaneseq
    %v307 = vshrl.u32 %v306, 7
    %v308 = vsub.s32 3, %v307
    %v309 = vrot.slane %v259, %v308
    %v310 = vlaneseq
    %v311 = vshrl.u32 %v310, 7
    %v312 = vsub.s32 4, %v311
    %v313 = vrot.slane %v259, %v312
    %v327 = vsel %vm177, %v265, 0.0
    %v328 = vsel %vm177, %v269, 0.0
    %v329 = vadd.f32 %v327, %v328
    %v330 = vsel %vm177, %v273, 0.0
    %v331 = vadd.f32 %v329, %v330
    %v332 = vsel %vm177, %v277, 0.0
    %v333 = vadd.f32 %v331, %v332
    %v334 = vsel %vm177, %v281, 0.0
    %v335 = vadd.f32 %v333, %v334
    %v336 = vsel %vm177, %v285, 0.0
    %v337 = vadd.f32 %v335, %v336
    %v338 = vsel %vm177, %v289, 0.0
    %v339 = vadd.f32 %v337, %v338
    %v340 = vsel %vm177, %v293, 0.0
    %v341 = vadd.f32 %v339, %v340
    %v342 = vsel %vm177, %v297, 0.0
    %v343 = vadd.f32 %v341, %v342
    %v344 = vsel %vm177, %v301, 0.0
    %v345 = vadd.f32 %v343, %v344
    %v346 = vsel %vm177, %v305, 0.0
    %v347 = vadd.f32 %v345, %v346
    %v348 = vsel %vm177, %v309, 0.0
    %v349 = vadd.f32 %v347, %v348
    %v350 = vsel %vm177, %v313, 0.0
    %v351 = vadd.f32 %v349, %v350
    %352 = vadd.xlane.f32.xlu0 %v351
    %v353 = vpop.xlane.xlu0 %352
    %v354 = vrot.slane %v353, 4
    %v355 = vadd.f32 %v353, %v354
    %v356 = vrot.slane %v355, 2
    %v357 = vadd.f32 %v355, %v356
    %v358 = vrot.slane %v357, 1
    %v359 = vadd.f32 %v357, %v358
    %s360 = vtos %v359
    %s361 = scalar_lea.smem [#allocation7], 128
    %362 = sst [smem:[%s361]] %s360
    // Predicated region
    $region18: #{tpu_custom_call.1} parent=1 // pred_check
      _
    $region19: #{tpu_custom_call.1} parent=1 // pred_check_branch
      %364 = sbr.rel (0) target = $region21
    $region20: #{tpu_custom_call.1} parent=1 // pred_region
      %s366 = ssub.s32 32, 32
      %367 = vsyncadd [#allocation5], %s366
      %s369 = sshll.u32 %s2, 4
      %s370 = int_to_ptr.vmem [resolvable:$true] %s369
      %372 = dma.smem_to_vmem [#allocation7], 32, %s370, [#allocation5]
    $region21: #{tpu_custom_call.1} parent=1 // pred_fallthru
      _
    // Predicated region
    $region22: #{tpu_custom_call.1} parent=1 // pred_check
      _
    $region23: #{tpu_custom_call.1} parent=1 // pred_check_branch
      %374 = sbr.rel (0) target = $region25
    $region24: #{tpu_custom_call.1} parent=1 // pred_region
      %375 = dma.done [#allocation5], 32
    $region25: #{tpu_custom_call.1} parent=1 // pred_fallthru
      _
    %376 = sfence
    %377 = vsyncpa [#allocation3], 1
    %378 = vsyncpa [#allocation4], 1
    %379 = vsyncpa [#allocation5], 1

</llo_original>
